<compile_context>
chip_gen: v7x
topology: tpu7x:2x2x1
jax: 0.10.0
libtpu: 0.0.40
codegen_flags: <defaults>
</compile_context>

<pallas_src>
import functools
import math

import jax
import jax.numpy as jnp
from jax.experimental import pallas as pl
from jax.experimental.pallas import tpu as pltpu

HIDDEN = 128
_LANES = 128


def _round_up(n, m):
    return ((n + m - 1) // m) * m


def _critic_kernel(x_ref, a_ref, w1x_ref, w1a_ref, b1_ref, w2_ref, b2_ref,
                   out_ref, *, lane_dense):
    # Layer 1 on the MXU with fp32 accumulation, split over x and a (no concat).
    h = jnp.dot(x_ref[...], w1x_ref[...], preferred_element_type=jnp.float32)
    h = h + jnp.dot(a_ref[...], w1a_ref[...], preferred_element_type=jnp.float32)
    h = jnp.maximum(h + b1_ref[...], 0.0)  # bias + ReLU on the VPU

    # Layer 2: VPU multiply + cross-lane (XLU) reduction instead of an N=1 MXU matmul.
    q = jnp.sum(h * w2_ref[...], axis=-1, keepdims=True) + b2_ref[0, 0]  # (TB, 1)

    if lane_dense:
        # Relayout the per-row scalars into a lane-dense (1, TB//128, 128) block so the
        # store is unmasked and the HBM writeback is contiguous (XLU/VMEM relayout only,
        # off the critical VPU/MXU slots).
        tb = q.shape[0]
        out_ref[...] = q.reshape(1, tb // _LANES, _LANES).astype(out_ref.dtype)
    else:
        out_ref[...] = q.astype(out_ref.dtype)


def critic_forward(x, a, params, *, tb_max=4096, lane_dense_out=True):
    """x: (B, input_dim), a: (B, action_dim)  ->  (B, 1) Q-values."""
    w1x, w1a, b1, w2, b2 = params
    B, Din = x.shape
    Da = a.shape[1]
    H = w1x.shape[1]

    # Large-batch path: batch tile TB is a multiple of 128 (lane-dense output rows),
    # sized so there are always >=2 grid steps (v7x megacore) and so Bp - B waste is small.
    lane_dense = lane_dense_out and B >= 2 * _LANES

    if lane_dense:
        tb_eff = max(_LANES, (tb_max // _LANES) * _LANES)     # force multiple of 128
        n_target = max(2, pl.cdiv(B, tb_eff))                 # >=2 steps for megacore
        TB = min(tb_eff, _round_up(pl.cdiv(B, n_target), _LANES))
        n_tiles = pl.cdiv(B, TB)                              # ragged last block, no pad
        Bp = n_tiles * TB
        R = TB // _LANES
        out_shape = jax.ShapeDtypeStruct((n_tiles, R, _LANES), jnp.float32)
        out_spec = pl.BlockSpec((1, R, _LANES), lambda i: (i, 0, 0))
    else:
        # Small-batch path: single whole-array block (block == full dims satisfies the
        # (8,128) constraint even for tiny B), plain (B, 1) output.
        TB = B
        n_tiles = 1
        Bp = B
        out_shape = jax.ShapeDtypeStruct((B, 1), jnp.float32)
        out_spec = pl.BlockSpec((TB, 1), lambda i: (i, 0))

    flops = 2 * Bp * (Din + Da) * H + 3 * Bp * H
    bytes_accessed = 4 * (B * (Din + Da) + Bp + (Din + Da) * H + 2 * H + 1)

    out = pl.pallas_call(
        functools.partial(_critic_kernel, lane_dense=lane_dense),
        out_shape=out_shape,
        grid=(n_tiles,),
        in_specs=[
            pl.BlockSpec((TB, Din), lambda i: (i, 0)),    # x tile (pipelined)
            pl.BlockSpec((TB, Da), lambda i: (i, 0)),     # a tile (pipelined)
            pl.BlockSpec((Din, H), lambda i: (0, 0)),     # w1x (VMEM-resident)
            pl.BlockSpec((Da, H), lambda i: (0, 0)),      # w1a (VMEM-resident)
            pl.BlockSpec((1, H), lambda i: (0, 0)),       # b1  (VMEM-resident)
            pl.BlockSpec((1, H), lambda i: (0, 0)),       # w2 row (VMEM-resident)
            pl.BlockSpec(memory_space=pltpu.MemorySpace.SMEM),  # b2 scalar
        ],
        out_specs=out_spec,
        compiler_params=pltpu.CompilerParams(
            dimension_semantics=("parallel",),   # megacore sharding of the batch on v7x
            vmem_limit_bytes=32 << 20,           # raise v5e's 16 MiB scoped default
        ),
        cost_estimate=pl.CostEstimate(
            flops=flops, transcendentals=0, bytes_accessed=bytes_accessed
        ),
    )(x, a, w1x, w1a, b1, w2, b2)

    if lane_dense:
        # (n_tiles, TB//128, 128) row-major == flat batch index; drop padded tail rows.
        return out.reshape(Bp, 1)[:B]
    return out


def init_critic_params(key, input_dim, action_dim, hidden=HIDDEN):
    """Matches nn.Linear default init U(-1/sqrt(fan_in), 1/sqrt(fan_in)).

    Layer-1 weight is stored pre-split and pre-transposed:
      w1x: (input_dim, hidden), w1a: (action_dim, hidden)   (== W1.T split by column block)
    Layer-2 weight keeps PyTorch's native shape: w2: (1, hidden), b2: (1, 1).
    """
    d = input_dim + action_dim
    k1, k2, k3, k4, k5 = jax.random.split(key, 5)
    bound1 = 1.0 / math.sqrt(d)
    bound2 = 1.0 / math.sqrt(hidden)
    w1x = jax.random.uniform(k1, (input_dim, hidden), jnp.float32, -bound1, bound1)
    w1a = jax.random.uniform(k2, (action_dim, hidden), jnp.float32, -bound1, bound1)
    b1 = jax.random.uniform(k3, (1, hidden), jnp.float32, -bound1, bound1)
    w2 = jax.random.uniform(k4, (1, hidden), jnp.float32, -bound2, bound2)
    b2 = jax.random.uniform(k5, (1, 1), jnp.float32, -bound2, bound2)
    return (w1x, w1a, b1, w2, b2)


if __name__ == "__main__":
    input_dim, action_dim = 16, 4
    key = jax.random.PRNGKey(0)
    kp = jax.random.fold_in(key, 0)

    params = init_critic_params(kp, input_dim, action_dim)
    w1x, w1a, b1, w2, b2 = params

    def reference(x, a):
        h = jnp.maximum(x @ w1x + a @ w1a + b1, 0.0)
        return h @ w2.T + b2

    # batch=2 exercises the small single-block path; batch=640 exercises the tiled,
    # lane-dense output path with a ragged (non-divisible) last block.
    for batch in (2, 640):
        kx, ka = jax.random.split(jax.random.fold_in(key, batch))
        x = jax.random.normal(kx, (batch, input_dim), jnp.float32)
        a = jax.random.normal(ka, (batch, action_dim), jnp.float32)

        q = critic_forward(x, a, params)
        jax.block_until_ready(q)

        q_ref = reference(x, a)
        assert q.shape == (batch, 1)
        assert jnp.allclose(q, q_ref, atol=1e-5, rtol=1e-5)

    print("KERNEL_OK")
</pallas_src>

<mosaic_0001>
module attributes {stable_mosaic.version = 11 : i64} {
  func.func @_critic_kernel(%arg0: i32, %arg1: memref<2x16xf32, #tpu.memory_space<vmem>>, %arg2: memref<2x4xf32, #tpu.memory_space<vmem>>, %arg3: memref<16x128xf32, #tpu.memory_space<vmem>>, %arg4: memref<4x128xf32, #tpu.memory_space<vmem>>, %arg5: memref<1x128xf32, #tpu.memory_space<vmem>>, %arg6: memref<1x128xf32, #tpu.memory_space<vmem>>, %arg7: memref<1x1xf32, #tpu.memory_space<smem>>, %arg8: memref<2x1xf32, #tpu.memory_space<vmem>>) attributes {dimension_semantics = [#tpu.dimension_semantics<parallel>], iteration_bounds = array<i64: 1>, scalar_prefetch = 0 : i64, scratch_operands = 0 : i64, tpu.core_type = #tpu.core_type<tc>, window_params = [{transform_indices = @transform_0, window_bounds = array<i64: 2, 16>}, {transform_indices = @transform_1, window_bounds = array<i64: 2, 4>}, {pipeline_mode = #tpu.pipeline_mode<synchronous>, transform_indices = @transform_2, window_bounds = array<i64: 16, 128>}, {pipeline_mode = #tpu.pipeline_mode<synchronous>, transform_indices = @transform_3, window_bounds = array<i64: 4, 128>}, {pipeline_mode = #tpu.pipeline_mode<synchronous>, transform_indices = @transform_4, window_bounds = array<i64: 1, 128>}, {pipeline_mode = #tpu.pipeline_mode<synchronous>, transform_indices = @transform_5, window_bounds = array<i64: 1, 128>}, {transform_indices = @transform_6, window_bounds = array<i64: 1, 1>}, {transform_indices = @transform_7, window_bounds = array<i64: 2, 1>}]} {
    %c0 = arith.constant 0 : index
    %c0_0 = arith.constant 0 : index
    %0 = vector.load %arg1[%c0, %c0_0] : memref<2x16xf32, #tpu.memory_space<vmem>>, vector<2x16xf32>
    %c0_1 = arith.constant 0 : index
    %c0_2 = arith.constant 0 : index
    %1 = vector.load %arg3[%c0_1, %c0_2] : memref<16x128xf32, #tpu.memory_space<vmem>>, vector<16x128xf32>
    %cst = arith.constant dense<0.000000e+00> : vector<2x128xf32>
    %2 = tpu.matmul %0, %1, %cst {dimension_numbers = #tpu.dot_dimension_numbers<[1], [0], [0], [1], [0, 0, 1, 1], [], []>} : vector<2x16xf32>, vector<16x128xf32>, vector<2x128xf32> -> vector<2x128xf32>
    %c0_3 = arith.constant 0 : index
    %c0_4 = arith.constant 0 : index
    %3 = vector.load %arg2[%c0_3, %c0_4] : memref<2x4xf32, #tpu.memory_space<vmem>>, vector<2x4xf32>
    %c0_5 = arith.constant 0 : index
    %c0_6 = arith.constant 0 : index
    %4 = vector.load %arg4[%c0_5, %c0_6] : memref<4x128xf32, #tpu.memory_space<vmem>>, vector<4x128xf32>
    %cst_7 = arith.constant dense<0.000000e+00> : vector<2x128xf32>
    %5 = tpu.matmul %3, %4, %cst_7 {dimension_numbers = #tpu.dot_dimension_numbers<[1], [0], [0], [1], [0, 0, 1, 1], [], []>} : vector<2x4xf32>, vector<4x128xf32>, vector<2x128xf32> -> vector<2x128xf32>
    %6 = arith.addf %2, %5 : vector<2x128xf32>
    %c0_8 = arith.constant 0 : index
    %c0_9 = arith.constant 0 : index
    %7 = vector.load %arg5[%c0_8, %c0_9] : memref<1x128xf32, #tpu.memory_space<vmem>>, vector<1x128xf32>
    %8 = vector.broadcast %7 : vector<1x128xf32> to vector<2x128xf32>
    %9 = arith.addf %6, %8 : vector<2x128xf32>
    %cst_10 = arith.constant 0.000000e+00 : f32
    %10 = vector.broadcast %cst_10 : f32 to vector<2x128xf32>
    %11 = arith.maximumf %9, %10 : vector<2x128xf32>
    %c0_11 = arith.constant 0 : index
    %c0_12 = arith.constant 0 : index
    %12 = vector.load %arg6[%c0_11, %c0_12] : memref<1x128xf32, #tpu.memory_space<vmem>>, vector<1x128xf32>
    %13 = vector.broadcast %12 : vector<1x128xf32> to vector<2x128xf32>
    %14 = arith.mulf %11, %13 : vector<2x128xf32>
    %cst_13 = arith.constant dense<0.000000e+00> : vector<2xf32>
    %15 = vector.multi_reduction <add>, %14, %cst_13 [1] : vector<2x128xf32> to vector<2xf32>
    %16 = vector.shape_cast %15 : vector<2xf32> to vector<2x1xf32>
    %c0_14 = arith.constant 0 : index
    %c0_15 = arith.constant 0 : index
    %17 = memref.load %arg7[%c0_14, %c0_15] : memref<1x1xf32, #tpu.memory_space<smem>>
    %18 = vector.broadcast %17 : f32 to vector<2x1xf32>
    %19 = arith.addf %16, %18 : vector<2x1xf32>
    %c0_16 = arith.constant 0 : index
    %c0_17 = arith.constant 0 : index
    %20 = vector.load %arg8[%c0_16, %c0_17] : memref<2x1xf32, #tpu.memory_space<vmem>>, vector<2x1xf32>
    tpu.vector_store %arg8[%c0_16, %c0_17], %19 {strides = array<i32>} : memref<2x1xf32, #tpu.memory_space<vmem>>, vector<2x1xf32>,
    return
  }
  func.func @transform_0(%arg0: i32) -> (i32, i32) {
    %c0_i32 = arith.constant 0 : i32
    %c0_i32_0 = arith.constant 0 : i32
    return %arg0, %c0_i32 : i32, i32
  }
  func.func @transform_1(%arg0: i32) -> (i32, i32) {
    %c0_i32 = arith.constant 0 : i32
    %c0_i32_0 = arith.constant 0 : i32
    return %arg0, %c0_i32 : i32, i32
  }
  func.func @transform_2(%arg0: i32) -> (i32, i32) {
    %c0_i32 = arith.constant 0 : i32
    %c0_i32_0 = arith.constant 0 : i32
    %c0_i32_1 = arith.constant 0 : i32
    return %c0_i32, %c0_i32_0 : i32, i32
  }
  func.func @transform_3(%arg0: i32) -> (i32, i32) {
    %c0_i32 = arith.constant 0 : i32
    %c0_i32_0 = arith.constant 0 : i32
    %c0_i32_1 = arith.constant 0 : i32
    return %c0_i32, %c0_i32_0 : i32, i32
  }
  func.func @transform_4(%arg0: i32) -> (i32, i32) {
    %c0_i32 = arith.constant 0 : i32
    %c0_i32_0 = arith.constant 0 : i32
    %c0_i32_1 = arith.constant 0 : i32
    return %c0_i32, %c0_i32_0 : i32, i32
  }
  func.func @transform_5(%arg0: i32) -> (i32, i32) {
    %c0_i32 = arith.constant 0 : i32
    %c0_i32_0 = arith.constant 0 : i32
    %c0_i32_1 = arith.constant 0 : i32
    return %c0_i32, %c0_i32_0 : i32, i32
  }
  func.func @transform_6(%arg0: i32) -> (i32, i32) {
    %c0_i32 = arith.constant 0 : i32
    %c0_i32_0 = arith.constant 0 : i32
    %c0_i32_1 = arith.constant 0 : i32
    return %c0_i32, %c0_i32_0 : i32, i32
  }
  func.func @transform_7(%arg0: i32) -> (i32, i32) {
    %c0_i32 = arith.constant 0 : i32
    %c0_i32_0 = arith.constant 0 : i32
    return %arg0, %c0_i32 : i32, i32
  }
}

</mosaic_0001>

<llo_original>
// kernel: tpu_custom_call.1
$region0: #{tpu_custom_call.1}
  #allocation0 [shape = 'u32[]', space=smem, size = 0x4, offset = 0x4, fixed_abs, tag = 'smem constant byte address 0x4 - core index']
  #allocation1 [shape = 'u32[144,128]{1,0:T(1,128)}', space=vmem, size = 0x12000, scoped, tag = 'internal scratch']
  #allocation2 [shape = 'f32[1,1]{1,0:T(1,128)S(6)}', space=smem, size = 0x200, scoped, tag = 'scoped memory for tpu_custom_call.1']
  %s0 = inlined_call_operand.vmem [shape: f32[2,16], index: 0, kind: input, shape index: {}]
  %s1 = inlined_call_operand.hbm [shape: f32[2,4], index: 1, kind: input, shape index: {}]
  %s2 = inlined_call_operand.hbm [shape: f32[16,128], index: 2, kind: input, shape index: {}]
  %s3 = inlined_call_operand.vmem [shape: f32[4,128], index: 3, kind: input, shape index: {}]
  %s4 = inlined_call_operand.vmem [shape: f32[1,128], index: 4, kind: input, shape index: {}]
  %s5 = inlined_call_operand.vmem [shape: f32[1,128], index: 5, kind: input, shape index: {}]
  %s6 = inlined_call_operand.<no memory space> [shape: f32[1,1], index: 6, kind: input, shape index: {}]
  %s7 = inlined_call_operand.vmem [shape: f32[2,1], index: 7, kind: output, shape index: {}]
  %s8 = sld [smem:[#allocation0]]
  $region46: #{tpu_custom_call.1} parent=0
    _
  %s10 = ssub.s32 1, %s8
  %s11 = scalar_select 0, %s10, %s8
  %12 = sst [smem:[#allocation2]] %s6
  $region1: #{tpu_custom_call.1} parent=0
    #allocation3 [shape = 'u8[1024]{0}', space=vmem, size = 0x400, scoped, tag = 'input window, operand 1, single buffered']
    #allocation4 [shape = 's32[1]{0}', space=sflag, size = 0x4, scoped, tag = 'scoped memory for tpu_custom_call.1']
    #allocation5 [shape = 'u8[8192]{0}', space=vmem, size = 0x2000, scoped, tag = 'input window, operand 2, single buffered']
    #allocation6 [shape = 's32[1]{0}', space=sflag, size = 0x4, scoped, tag = 'scoped memory for tpu_custom_call.1']
    %13 = vsyncpa [#allocation4], 0
    %14 = vsyncpa [#allocation6], 0
    // Predicated region
    $region2: #{tpu_custom_call.1} parent=1 // pred_check
      _
    $region3: #{tpu_custom_call.1} parent=1 // pred_check_branch
      %16 = sbr.rel (0) target = $region5
    $region4: #{tpu_custom_call.1} parent=1 // pred_region
      _
    $region5: #{tpu_custom_call.1} parent=1 // pred_fallthru
      _
    // Predicated region
    $region6: #{tpu_custom_call.1} parent=1 // pred_check
      _
    $region7: #{tpu_custom_call.1} parent=1 // pred_check_branch
      %18 = sbr.rel (0) target = $region9
    $region8: #{tpu_custom_call.1} parent=1 // pred_region
      %s20 = ssub.s32 32, 32
      %21 = vsyncadd [#allocation4], %s20
      %s23 = sshll.u32 [#allocation3], 4
      %s24 = int_to_ptr.vmem [resolvable:$true] %s23
      %26 = dma.hbm_to_vmem [thread:$0]  %s1, 32, %s24, [#allocation4]
    $region9: #{tpu_custom_call.1} parent=1 // pred_fallthru
      _
    // Predicated region
    $region10: #{tpu_custom_call.1} parent=1 // pred_check
      _
    $region11: #{tpu_custom_call.1} parent=1 // pred_check_branch
      %28 = sbr.rel (0) target = $region13
    $region12: #{tpu_custom_call.1} parent=1 // pred_region
      %s30 = ssub.s32 256, 256
      %31 = vsyncadd [#allocation6], %s30
      %s32 = sshll.u32 [#allocation5], 4
      %s33 = int_to_ptr.vmem [resolvable:$true] %s32
      %38 = dma.hbm_to_vmem [thread:$0]  %s2, 256, %s33, [#allocation6], 128, 128, 8
    $region13: #{tpu_custom_call.1} parent=1 // pred_fallthru
      _
    // Predicated region
    $region14: #{tpu_custom_call.1} parent=1 // pred_check
      _
    $region15: #{tpu_custom_call.1} parent=1 // pred_check_branch
      %40 = sbr.rel (0) target = $region17
    $region16: #{tpu_custom_call.1} parent=1 // pred_region
      _
    $region17: #{tpu_custom_call.1} parent=1 // pred_fallthru
      _
    // Predicated region
    $region18: #{tpu_custom_call.1} parent=1 // pred_check
      _
    $region19: #{tpu_custom_call.1} parent=1 // pred_check_branch
      %42 = sbr.rel (0) target = $region21
    $region20: #{tpu_custom_call.1} parent=1 // pred_region
      _
    $region21: #{tpu_custom_call.1} parent=1 // pred_fallthru
      _
    // Predicated region
    $region22: #{tpu_custom_call.1} parent=1 // pred_check
      _
    $region23: #{tpu_custom_call.1} parent=1 // pred_check_branch
      %44 = sbr.rel (0) target = $region25
    $region24: #{tpu_custom_call.1} parent=1 // pred_region
      _
    $region25: #{tpu_custom_call.1} parent=1 // pred_fallthru
      _
    // Predicated region
    $region26: #{tpu_custom_call.1} parent=1 // pred_check
      _
    $region27: #{tpu_custom_call.1} parent=1 // pred_check_branch
      %46 = sbr.rel (0) target = $region29
    $region28: #{tpu_custom_call.1} parent=1 // pred_region
      _
    $region29: #{tpu_custom_call.1} parent=1 // pred_fallthru
      _
    // Predicated region
    $region30: #{tpu_custom_call.1} parent=1 // pred_check
      _
    $region31: #{tpu_custom_call.1} parent=1 // pred_check_branch
      %48 = sbr.rel (0) target = $region33
    $region32: #{tpu_custom_call.1} parent=1 // pred_region
      %49 = dma.done [#allocation4], 32
    $region33: #{tpu_custom_call.1} parent=1 // pred_fallthru
      _
    // Predicated region
    $region34: #{tpu_custom_call.1} parent=1 // pred_check
      _
    $region35: #{tpu_custom_call.1} parent=1 // pred_check_branch
      %51 = sbr.rel (0) target = $region37
    $region36: #{tpu_custom_call.1} parent=1 // pred_region
      %52 = dma.done [#allocation6], 256
    $region37: #{tpu_custom_call.1} parent=1 // pred_fallthru
      _
    %v53 = vld [vmem:[%s0] sm:$0x3]
    %v54 = vld [vmem:[#allocation5] sm:$0xff]
    %v55 = vld [vmem:[#allocation5 + $0x8] sm:$0xff]
    %v56 = vld [vmem:[#allocation3] sm:$0x3]
    %v57 = vld [vmem:[%s3] sm:$0xf]
    %vm58 = vcmask 31744
    %v60 = vsel %vm58, %v56, 0
    %vm62 = vcmask 1043456
    %v64 = vsel %vm62, %v57, 0
    %66 = vmatprep.subr.mxu0 0.0
    %67 = vmatpush1.msra.mxu0 %v64
    %68 = vmatprep.subr.mxu0 0.0
    %69 = vmatpush1.msra.mxu0 0.0
    %70 = vmatprep.subr.mxu0 0.0
    %71 = vmatpush1.msra.mxu0 0.0
    %72 = vmatprep.subr.mxu0 0.0
    %73 = vmatpush1.msra.mxu0 0.0
    %74 = vmatprep.subr.mxu0 0.0
    %75 = vmatpush1.msra.mxu0 0.0
    %76 = vmatprep.subr.mxu0 0.0
    %77 = vmatpush1.msra.mxu0 0.0
    %78 = vmatprep.subr.mxu0 0.0
    %79 = vmatpush1.msra.mxu0 0.0
    %80 = vmatprep.subr.mxu0 0.0
    %81 = vmatpush1.msra.mxu0 0.0
    %82 = vmatprep.subr.mxu0 0.0
    %83 = vmatpush1.msra.mxu0 0.0
    %84 = vmatprep.subr.mxu0 0.0
    %85 = vmatpush1.msra.mxu0 0.0
    %86 = vmatprep.subr.mxu0 0.0
    %87 = vmatpush1.msra.mxu0 0.0
    %88 = vmatprep.subr.mxu0 0.0
    %89 = vmatpush1.msra.mxu0 0.0
    %90 = vmatprep.subr.mxu0 0.0
    %91 = vmatpush1.msra.mxu0 0.0
    %92 = vmatprep.subr.mxu0 0.0
    %93 = vmatpush1.msra.mxu0 0.0
    %94 = vmatprep.subr.mxu0 0.0
    %95 = vmatpush1.msra.mxu0 0.0
    %96 = vmatprep.subr.mxu0 0.0
    %97 = vmatpush1.msra.mxu0 0.0
    %98 = vmatprep.subr.mxu0 0.0
    %99 = vmatpush1.msra.mxu0 0.0
    %100 = vmatprep.subr.mxu0 0.0
    %101 = vmatpush1.msra.mxu0 0.0
    %102 = vmatprep.subr.mxu0 0.0
    %103 = vmatpush1.msra.mxu0 0.0
    %104 = vmatprep.subr.mxu0 0.0
    %105 = vmatpush1.msra.mxu0 0.0
    %106 = vmatprep.subr.mxu0 0.0
    %107 = vmatpush1.msra.mxu0 0.0
    %108 = vmatprep.subr.mxu0 0.0
    %109 = vmatpush1.msra.mxu0 0.0
    %110 = vmatprep.subr.mxu0 0.0
    %111 = vmatpush1.msra.mxu0 0.0
    %112 = vmatprep.subr.mxu0 0.0
    %113 = vmatpush1.msra.mxu0 0.0
    %114 = vmatprep.subr.mxu0 0.0
    %115 = vmatpush1.msra.mxu0 0.0
    %116 = vmatprep.subr.mxu0 0.0
    %117 = vmatpush1.msra.mxu0 0.0
    %118 = vmatprep.subr.mxu0 0.0
    %119 = vmatpush1.msra.mxu0 0.0
    %120 = vmatprep.subr.mxu0 0.0
    %121 = vmatpush1.msra.mxu0 0.0
    %122 = vmatprep.subr.mxu0 0.0
    %123 = vmatpush1.msra.mxu0 0.0
    %124 = vmatprep.subr.mxu0 0.0
    %125 = vmatpush1.msra.mxu0 0.0
    %126 = vmatprep.subr.mxu0 0.0
    %127 = vmatpush1.msra.mxu0 0.0
    %128 = vmatprep.subr.mxu0 0.0
    %129 = vmatpush1.msra.mxu0 0.0
    %130 = vmatprep.mubr.f32.mxu0 0.0
    %131 = vmatmul.mubr.f32.gmra.mrb[0].mxu0 %v60
    %v132 = vpop.f32.mrb[0].mxu0
    %v133 = vadd.f32 0.0, %v132
    %v134 = vpop.f32.mrb[0].mxu0
    %135 = vdwg.mxu0
    %vm136 = vcmask 130048
    %v138 = vsel %vm136, %v53, 0
    %140 = vmatprep.subr.mxu0 0.0
    %141 = vmatpush1.msra.mxu0 %v54
    %142 = vmatprep.subr.mxu0 0.0
    %143 = vmatpush1.msra.mxu0 %v55
    %144 = vmatprep.subr.mxu0 0.0
    %145 = vmatpush1.msra.mxu0 0.0
    %146 = vmatprep.subr.mxu0 0.0
    %147 = vmatpush1.msra.mxu0 0.0
    %148 = vmatprep.subr.mxu0 0.0
    %149 = vmatpush1.msra.mxu0 0.0
    %150 = vmatprep.subr.mxu0 0.0
    %151 = vmatpush1.msra.mxu0 0.0
    %152 = vmatprep.subr.mxu0 0.0
    %153 = vmatpush1.msra.mxu0 0.0
    %154 = vmatprep.subr.mxu0 0.0
    %155 = vmatpush1.msra.mxu0 0.0
    %156 = vmatprep.subr.mxu0 0.0
    %157 = vmatpush1.msra.mxu0 0.0
    %158 = vmatprep.subr.mxu0 0.0
    %159 = vmatpush1.msra.mxu0 0.0
    %160 = vmatprep.subr.mxu0 0.0
    %161 = vmatpush1.msra.mxu0 0.0
    %162 = vmatprep.subr.mxu0 0.0
    %163 = vmatpush1.msra.mxu0 0.0
    %164 = vmatprep.subr.mxu0 0.0
    %165 = vmatpush1.msra.mxu0 0.0
    %166 = vmatprep.subr.mxu0 0.0
    %167 = vmatpush1.msra.mxu0 0.0
    %168 = vmatprep.subr.mxu0 0.0
    %169 = vmatpush1.msra.mxu0 0.0
    %170 = vmatprep.subr.mxu0 0.0
    %171 = vmatpush1.msra.mxu0 0.0
    %172 = vmatprep.subr.mxu0 0.0
    %173 = vmatpush1.msra.mxu0 0.0
    %174 = vmatprep.subr.mxu0 0.0
    %175 = vmatpush1.msra.mxu0 0.0
    %176 = vmatprep.subr.mxu0 0.0
    %177 = vmatpush1.msra.mxu0 0.0
    %178 = vmatprep.subr.mxu0 0.0
    %179 = vmatpush1.msra.mxu0 0.0
    %180 = vmatprep.subr.mxu0 0.0
    %181 = vmatpush1.msra.mxu0 0.0
    %182 = vmatprep.subr.mxu0 0.0
    %183 = vmatpush1.msra.mxu0 0.0
    %184 = vmatprep.subr.mxu0 0.0
    %185 = vmatpush1.msra.mxu0 0.0
    %186 = vmatprep.subr.mxu0 0.0
    %187 = vmatpush1.msra.mxu0 0.0
    %188 = vmatprep.subr.mxu0 0.0
    %189 = vmatpush1.msra.mxu0 0.0
    %190 = vmatprep.subr.mxu0 0.0
    %191 = vmatpush1.msra.mxu0 0.0
    %192 = vmatprep.subr.mxu0 0.0
    %193 = vmatpush1.msra.mxu0 0.0
    %194 = vmatprep.subr.mxu0 0.0
    %195 = vmatpush1.msra.mxu0 0.0
    %196 = vmatprep.subr.mxu0 0.0
    %197 = vmatpush1.msra.mxu0 0.0
    %198 = vmatprep.subr.mxu0 0.0
    %199 = vmatpush1.msra.mxu0 0.0
    %200 = vmatprep.subr.mxu0 0.0
    %201 = vmatpush1.msra.mxu0 0.0
    %202 = vmatprep.subr.mxu0 0.0
    %203 = vmatpush1.msra.mxu0 0.0
    %204 = vmatprep.mubr.f32.mxu0 0.0
    %205 = vmatmul.mubr.f32.gmra.mrb[0].mxu0 %v138
    %v206 = vpop.f32.mrb[0].mxu0
    %v207 = vadd.f32 %v133, %v206
    %v208 = vpop.f32.mrb[0].mxu0
    %209 = vdwg.mxu0
    %v210 = vld [vmem:[%s4] sm:$0x1]
    %v212 = vlaneseq
    %v213 = vshrl.u32 %v212, 7
    %v214 = vsub.s32 0, %v213
    %v215 = vrot.slane %v210, %v214
    %v217 = vadd.f32 %v207, %v215
    %v218 = vmax.f32 %v217, 0.0
    %v219 = vld [vmem:[%s5] sm:$0x1]
    %v221 = vlaneseq
    %v222 = vshrl.u32 %v221, 7
    %v223 = vsub.s32 0, %v222
    %v224 = vrot.slane %v219, %v223
    %v226 = vmul.f32 %v218, %v224
    %vm227 = vcmask 1041408
    %v228 = vsel %vm227, %v226, 0.0
    %229 = vadd.xlane.f32.xlu0 %v228
    %v230 = vpop.xlane.xlu0 %229
    %s231 = sld [smem:[#allocation2]]
    %v232 = vstv %s231
    %v233 = vadd.f32 %v230, %v232
    %vm234 = vcmask 1024
    %235 = vst.msk [vmem:[%s7] sm:$0x3] %vm234, %v233
    // Predicated region
    $region38: #{tpu_custom_call.1} parent=1 // pred_check
      _
    $region39: #{tpu_custom_call.1} parent=1 // pred_check_branch
      %237 = sbr.rel (0) target = $region41
    $region40: #{tpu_custom_call.1} parent=1 // pred_region
      _
    $region41: #{tpu_custom_call.1} parent=1 // pred_fallthru
      _
    // Predicated region
    $region42: #{tpu_custom_call.1} parent=1 // pred_check
      _
    $region43: #{tpu_custom_call.1} parent=1 // pred_check_branch
      %239 = sbr.rel (0) target = $region45
    $region44: #{tpu_custom_call.1} parent=1 // pred_region
      _
    $region45: #{tpu_custom_call.1} parent=1 // pred_fallthru
      _
    %240 = vsyncpa [#allocation4], 1
    %241 = vsyncpa [#allocation6], 1

</llo_original>
